<compile_context>
chip_gen: v7x
topology: tpu7x:2x2x1
jax: 0.10.0
libtpu: 0.0.40
codegen_flags: <defaults>
</compile_context>

<pallas_src>
import functools

import jax
import jax.numpy as jnp
from jax.experimental import pallas as pl
from jax.experimental.pallas import tpu as pltpu

N_MID = 256           # hidden width of the module
_TB_DEFAULT = 256     # batch-tile rows (f32); small enough for v7x's 64 MiB VMEM


def _round_up(x, m):
    return ((x + m - 1) // m) * m


# ----------------------------------------------------------------------------- kernel
def _dueling_dqn_kernel(x_ref, w1_ref, b1_ref, w2_ref, b2_ref, wh_ref, bh_ref,
                        out_ref, *, n_out, matmul_dtype):
    """One batch tile: x (TB, K1) -> q (TB, N_PAD)."""
    cd = matmul_dtype

    # fc1 + relu   (K1 = n_in padded to a multiple of 128; zero pad rows of w1 are exact no-ops)
    x = x_ref[...].astype(cd)
    h1 = jnp.dot(x, w1_ref[...].astype(cd), preferred_element_type=jnp.float32) + b1_ref[...]
    h1 = jnp.maximum(h1, 0.0)                                        # (TB, 256) f32

    # fc2 + relu
    h2 = jnp.dot(h1.astype(cd), w2_ref[...].astype(cd),
                 preferred_element_type=jnp.float32) + b2_ref[...]
    h2 = jnp.maximum(h2, 0.0)                                        # (TB, 256) f32

    # fused heads: cols [0:n_out] = advantage, col n_out = value, rest = exact zeros
    heads = jnp.dot(h2.astype(cd), wh_ref[...].astype(cd),
                    preferred_element_type=jnp.float32) + bh_ref[...]  # (TB, N_PAD)

    val = heads[:, n_out:n_out + 1]                                   # (TB, 1)
    # padded columns beyond n_out are exactly zero, so a full-lane reduce minus val
    # equals sum(adv) -- avoids a masked sub-lane reduction.
    adv_sum = jnp.sum(heads, axis=1, keepdims=True) - val             # (TB, 1)
    adv_mean = adv_sum * (1.0 / n_out)

    # dueling combine on the full lane-dense slab (extra lanes are sliced off outside)
    q = val + heads - adv_mean                                        # (TB, N_PAD)
    out_ref[...] = jnp.tanh(q).astype(out_ref.dtype)


# ----------------------------------------------------------------------------- param prep (once)
def prepare_params(params, n_out):
    """Transpose / pad / fuse PyTorch-layout params once, out of the hot path."""
    n_in = params["w1"].shape[1]
    K1 = _round_up(max(n_in, 1), 128)
    N_PAD = _round_up(n_out + 1, 128)
    H = N_MID

    w1 = jnp.zeros((K1, H), jnp.float32).at[:n_in, :].set(params["w1"].T)
    b1 = params["b1"].reshape(1, H).astype(jnp.float32)
    w2 = params["w2"].T.astype(jnp.float32)
    b2 = params["b2"].reshape(1, H).astype(jnp.float32)

    # fused head: [adv columns | value column | zero padding]
    wh = jnp.zeros((H, N_PAD), jnp.float32)
    wh = wh.at[:, :n_out].set(params["w_adv"].T)
    wh = wh.at[:, n_out].set(params["w_v"].reshape(H))
    bh = jnp.zeros((1, N_PAD), jnp.float32)
    bh = bh.at[0, :n_out].set(params["b_adv"])
    bh = bh.at[0, n_out].set(params["b_v"][0])

    return {"w1": w1, "b1": b1, "w2": w2, "b2": b2, "wh": wh, "bh": bh}


# ----------------------------------------------------------------------------- forward
@functools.partial(jax.jit, static_argnames=("n_out", "use_bf16"))
def dueling_dqn_forward(x, prep, *, n_out, use_bf16=False):
    """x: (B, n_in) f32. prep: output of prepare_params. Returns (B, n_out) f32."""
    B, n_in = x.shape
    H = N_MID
    K1 = prep["w1"].shape[0]
    N_PAD = prep["wh"].shape[1]

    # batch tiling: lane-/sublane-clean tiles, bounded for v7x's smaller VMEM
    TB = min(_TB_DEFAULT, _round_up(B, 8))
    Bp = _round_up(B, TB)
    grid = (Bp // TB,)

    # zero-pad batch rows and the fc1 K dimension (zeros are exact no-ops through the net)
    xp = jnp.zeros((Bp, K1), jnp.float32).at[:B, :n_in].set(x)

    matmul_dtype = jnp.bfloat16 if use_bf16 else jnp.float32
    kernel = functools.partial(_dueling_dqn_kernel, n_out=n_out, matmul_dtype=matmul_dtype)

    flops = 2 * Bp * (K1 * H + H * H + H * N_PAD)
    bytes_accessed = 4 * (Bp * K1 + K1 * H + H + H * H + H + H * N_PAD + N_PAD + Bp * N_PAD)
    cost = pl.CostEstimate(flops=flops, transcendentals=Bp * N_PAD,
                           bytes_accessed=bytes_accessed)

    out_padded = pl.pallas_call(
        kernel,
        out_shape=jax.ShapeDtypeStruct((Bp, N_PAD), jnp.float32),
        grid=grid,
        in_specs=[
            pl.BlockSpec((TB, K1), lambda i: (i, 0)),      # x tile (pipelined)
            pl.BlockSpec((K1, H), lambda i: (0, 0)),       # w1 (resident)
            pl.BlockSpec((1, H), lambda i: (0, 0)),        # b1
            pl.BlockSpec((H, H), lambda i: (0, 0)),        # w2
            pl.BlockSpec((1, H), lambda i: (0, 0)),        # b2
            pl.BlockSpec((H, N_PAD), lambda i: (0, 0)),    # fused head weights
            pl.BlockSpec((1, N_PAD), lambda i: (0, 0)),    # fused head bias
        ],
        out_specs=pl.BlockSpec((TB, N_PAD), lambda i: (i, 0)),  # lane-dense output slab
        compiler_params=pltpu.CompilerParams(dimension_semantics=("parallel",)),
        cost_estimate=cost,
    )(xp, prep["w1"], prep["b1"], prep["w2"], prep["b2"], prep["wh"], prep["bh"])

    return out_padded[:B, :n_out]


# ----------------------------------------------------------------------------- reference / init
def init_params(key, n_in, n_out):
    """Deterministic synthetic init (PyTorch Linear layout: weight (out, in))."""
    ks = jax.random.split(key, 8)

    def u(k, shape, fan_in):
        bound = 1.0 / jnp.sqrt(fan_in)
        return jax.random.uniform(k, shape, jnp.float32, -bound, bound)

    return {
        "w1":    u(ks[0], (N_MID, n_in), n_in),
        "b1":    u(ks[1], (N_MID,),      n_in),
        "w2":    u(ks[2], (N_MID, N_MID), N_MID),
        "b2":    u(ks[3], (N_MID,),       N_MID),
        "w_adv": u(ks[4], (n_out, N_MID), N_MID),
        "b_adv": u(ks[5], (n_out,),       N_MID),
        "w_v":   u(ks[6], (1, N_MID),     N_MID),
        "b_v":   u(ks[7], (1,),           N_MID),
    }


def reference_forward(x, p):
    """Pure-JAX reference (mirrors the PyTorch forward)."""
    h1 = jax.nn.relu(x @ p["w1"].T + p["b1"])
    h2 = jax.nn.relu(h1 @ p["w2"].T + p["b2"])
    adv = h2 @ p["w_adv"].T + p["b_adv"]
    val = h2 @ p["w_v"].T + p["b_v"]
    q = val + adv - adv.mean(axis=1, keepdims=True)
    return jnp.tanh(q)


if __name__ == "__main__":
    key = jax.random.PRNGKey(0)
    k_x, k_p = jax.random.split(key)

    B, n_in, n_out = 8, 32, 16
    x = jax.random.normal(k_x, (B, n_in), dtype=jnp.float32)
    params = init_params(k_p, n_in, n_out)

    prep = prepare_params(params, n_out)          # done once, outside the hot path
    out = dueling_dqn_forward(x, prep, n_out=n_out)
    out = jax.block_until_ready(out)

    ref = reference_forward(x, params)
    assert out.shape == (B, n_out)
    assert jnp.allclose(out, ref, atol=1e-5, rtol=1e-5), "mismatch vs reference"

    print("KERNEL_OK")
</pallas_src>

<mosaic_0001>
module attributes {stable_mosaic.version = 11 : i64} {
  func.func @_dueling_dqn_kernel(%arg0: i32, %arg1: memref<8x128xf32, #tpu.memory_space<vmem>>, %arg2: memref<128x256xf32, #tpu.memory_space<vmem>>, %arg3: memref<1x256xf32, #tpu.memory_space<vmem>>, %arg4: memref<256x256xf32, #tpu.memory_space<vmem>>, %arg5: memref<1x256xf32, #tpu.memory_space<vmem>>, %arg6: memref<256x128xf32, #tpu.memory_space<vmem>>, %arg7: memref<1x128xf32, #tpu.memory_space<vmem>>, %arg8: memref<8x128xf32, #tpu.memory_space<vmem>>) attributes {dimension_semantics = [#tpu.dimension_semantics<parallel>], iteration_bounds = array<i64: 1>, scalar_prefetch = 0 : i64, scratch_operands = 0 : i64, tpu.core_type = #tpu.core_type<tc>, window_params = [{transform_indices = @transform_0, window_bounds = array<i64: 8, 128>}, {pipeline_mode = #tpu.pipeline_mode<synchronous>, transform_indices = @transform_1, window_bounds = array<i64: 128, 256>}, {pipeline_mode = #tpu.pipeline_mode<synchronous>, transform_indices = @transform_2, window_bounds = array<i64: 1, 256>}, {pipeline_mode = #tpu.pipeline_mode<synchronous>, transform_indices = @transform_3, window_bounds = array<i64: 256, 256>}, {pipeline_mode = #tpu.pipeline_mode<synchronous>, transform_indices = @transform_4, window_bounds = array<i64: 1, 256>}, {pipeline_mode = #tpu.pipeline_mode<synchronous>, transform_indices = @transform_5, window_bounds = array<i64: 256, 128>}, {pipeline_mode = #tpu.pipeline_mode<synchronous>, transform_indices = @transform_6, window_bounds = array<i64: 1, 128>}, {transform_indices = @transform_7, window_bounds = array<i64: 8, 128>}]} {
    %c0 = arith.constant 0 : index
    %c0_0 = arith.constant 0 : index
    %0 = vector.load %arg1[%c0, %c0_0] : memref<8x128xf32, #tpu.memory_space<vmem>>, vector<8x128xf32>
    %c0_1 = arith.constant 0 : index
    %c0_2 = arith.constant 0 : index
    %1 = vector.load %arg2[%c0_1, %c0_2] : memref<128x256xf32, #tpu.memory_space<vmem>>, vector<128x256xf32>
    %cst = arith.constant dense<0.000000e+00> : vector<8x256xf32>
    %2 = tpu.matmul %0, %1, %cst {dimension_numbers = #tpu.dot_dimension_numbers<[1], [0], [0], [1], [0, 0, 1, 1], [], []>} : vector<8x128xf32>, vector<128x256xf32>, vector<8x256xf32> -> vector<8x256xf32>
    %c0_3 = arith.constant 0 : index
    %c0_4 = arith.constant 0 : index
    %3 = vector.load %arg3[%c0_3, %c0_4] : memref<1x256xf32, #tpu.memory_space<vmem>>, vector<1x256xf32>
    %4 = vector.broadcast %3 : vector<1x256xf32> to vector<8x256xf32>
    %5 = arith.addf %2, %4 : vector<8x256xf32>
    %cst_5 = arith.constant 0.000000e+00 : f32
    %6 = vector.broadcast %cst_5 : f32 to vector<8x256xf32>
    %7 = arith.maximumf %5, %6 : vector<8x256xf32>
    %c0_6 = arith.constant 0 : index
    %c0_7 = arith.constant 0 : index
    %8 = vector.load %arg4[%c0_6, %c0_7] : memref<256x256xf32, #tpu.memory_space<vmem>>, vector<256x256xf32>
    %cst_8 = arith.constant dense<0.000000e+00> : vector<8x256xf32>
    %9 = tpu.matmul %7, %8, %cst_8 {dimension_numbers = #tpu.dot_dimension_numbers<[1], [0], [0], [1], [0, 0, 1, 1], [], []>} : vector<8x256xf32>, vector<256x256xf32>, vector<8x256xf32> -> vector<8x256xf32>
    %c0_9 = arith.constant 0 : index
    %c0_10 = arith.constant 0 : index
    %10 = vector.load %arg5[%c0_9, %c0_10] : memref<1x256xf32, #tpu.memory_space<vmem>>, vector<1x256xf32>
    %11 = vector.broadcast %10 : vector<1x256xf32> to vector<8x256xf32>
    %12 = arith.addf %9, %11 : vector<8x256xf32>
    %cst_11 = arith.constant 0.000000e+00 : f32
    %13 = vector.broadcast %cst_11 : f32 to vector<8x256xf32>
    %14 = arith.maximumf %12, %13 : vector<8x256xf32>
    %c0_12 = arith.constant 0 : index
    %c0_13 = arith.constant 0 : index
    %15 = vector.load %arg6[%c0_12, %c0_13] : memref<256x128xf32, #tpu.memory_space<vmem>>, vector<256x128xf32>
    %cst_14 = arith.constant dense<0.000000e+00> : vector<8x128xf32>
    %16 = tpu.matmul %14, %15, %cst_14 {dimension_numbers = #tpu.dot_dimension_numbers<[1], [0], [0], [1], [0, 0, 1, 1], [], []>} : vector<8x256xf32>, vector<256x128xf32>, vector<8x128xf32> -> vector<8x128xf32>
    %c0_15 = arith.constant 0 : index
    %c0_16 = arith.constant 0 : index
    %17 = vector.load %arg7[%c0_15, %c0_16] : memref<1x128xf32, #tpu.memory_space<vmem>>, vector<1x128xf32>
    %18 = vector.broadcast %17 : vector<1x128xf32> to vector<8x128xf32>
    %19 = arith.addf %16, %18 : vector<8x128xf32>
    %20 = vector.extract_strided_slice %19 {offsets = [0, 16], sizes = [8, 1], strides = [1, 1]} : vector<8x128xf32> to vector<8x1xf32>
    %cst_17 = arith.constant dense<0.000000e+00> : vector<8xf32>
    %21 = vector.multi_reduction <add>, %19, %cst_17 [1] : vector<8x128xf32> to vector<8xf32>
    %22 = vector.shape_cast %21 : vector<8xf32> to vector<8x1xf32>
    %23 = arith.subf %22, %20 : vector<8x1xf32>
    %cst_18 = arith.constant 6.250000e-02 : f32
    %24 = vector.broadcast %cst_18 : f32 to vector<8x1xf32>
    %25 = arith.mulf %23, %24 : vector<8x1xf32>
    %26 = vector.broadcast %20 : vector<8x1xf32> to vector<8x128xf32>
    %27 = arith.addf %26, %19 : vector<8x128xf32>
    %28 = vector.broadcast %25 : vector<8x1xf32> to vector<8x128xf32>
    %29 = arith.subf %27, %28 : vector<8x128xf32>
    %30 = math.tanh %29 : vector<8x128xf32>
    %c0_19 = arith.constant 0 : index
    %c0_20 = arith.constant 0 : index
    %31 = vector.load %arg8[%c0_19, %c0_20] : memref<8x128xf32, #tpu.memory_space<vmem>>, vector<8x128xf32>
    tpu.vector_store %arg8[%c0_19, %c0_20], %30 {strides = array<i32>} : memref<8x128xf32, #tpu.memory_space<vmem>>, vector<8x128xf32>,
    return
  }
  func.func @transform_0(%arg0: i32) -> (i32, i32) {
    %c0_i32 = arith.constant 0 : i32
    %c0_i32_0 = arith.constant 0 : i32
    return %arg0, %c0_i32 : i32, i32
  }
  func.func @transform_1(%arg0: i32) -> (i32, i32) {
    %c0_i32 = arith.constant 0 : i32
    %c0_i32_0 = arith.constant 0 : i32
    %c0_i32_1 = arith.constant 0 : i32
    return %c0_i32, %c0_i32_0 : i32, i32
  }
  func.func @transform_2(%arg0: i32) -> (i32, i32) {
    %c0_i32 = arith.constant 0 : i32
    %c0_i32_0 = arith.constant 0 : i32
    %c0_i32_1 = arith.constant 0 : i32
    return %c0_i32, %c0_i32_0 : i32, i32
  }
  func.func @transform_3(%arg0: i32) -> (i32, i32) {
    %c0_i32 = arith.constant 0 : i32
    %c0_i32_0 = arith.constant 0 : i32
    %c0_i32_1 = arith.constant 0 : i32
    return %c0_i32, %c0_i32_0 : i32, i32
  }
  func.func @transform_4(%arg0: i32) -> (i32, i32) {
    %c0_i32 = arith.constant 0 : i32
    %c0_i32_0 = arith.constant 0 : i32
    %c0_i32_1 = arith.constant 0 : i32
    return %c0_i32, %c0_i32_0 : i32, i32
  }
  func.func @transform_5(%arg0: i32) -> (i32, i32) {
    %c0_i32 = arith.constant 0 : i32
    %c0_i32_0 = arith.constant 0 : i32
    %c0_i32_1 = arith.constant 0 : i32
    return %c0_i32, %c0_i32_0 : i32, i32
  }
  func.func @transform_6(%arg0: i32) -> (i32, i32) {
    %c0_i32 = arith.constant 0 : i32
    %c0_i32_0 = arith.constant 0 : i32
    %c0_i32_1 = arith.constant 0 : i32
    return %c0_i32, %c0_i32_0 : i32, i32
  }
  func.func @transform_7(%arg0: i32) -> (i32, i32) {
    %c0_i32 = arith.constant 0 : i32
    %c0_i32_0 = arith.constant 0 : i32
    return %arg0, %c0_i32 : i32, i32
  }
}

</mosaic_0001>

<llo_original>
// kernel: dueling_dqn_forward.1
$region0: #{dueling_dqn_forward.1}
  #allocation0 [shape = 'u32[]', space=smem, size = 0x4, offset = 0x4, fixed_abs, tag = 'smem constant byte address 0x4 - core index']
  #allocation1 [shape = 'u32[144,128]{1,0:T(1,128)}', space=vmem, size = 0x12000, scoped, tag = 'internal scratch']
  %s0 = inlined_call_operand.vmem [shape: f32[8,128], index: 0, kind: input, shape index: {}]
  %s1 = inlined_call_operand.hbm [shape: f32[128,256], index: 1, kind: input, shape index: {}]
  %s2 = inlined_call_operand.vmem [shape: f32[1,256], index: 2, kind: input, shape index: {}]
  %s3 = inlined_call_operand.hbm [shape: f32[256,256], index: 3, kind: input, shape index: {}]
  %s4 = inlined_call_operand.vmem [shape: f32[1,256], index: 4, kind: input, shape index: {}]
  %s5 = inlined_call_operand.hbm [shape: f32[256,128], index: 5, kind: input, shape index: {}]
  %s6 = inlined_call_operand.vmem [shape: f32[1,128], index: 6, kind: input, shape index: {}]
  %s7 = inlined_call_operand.hbm [shape: f32[8,128], index: 7, kind: output, shape index: {}]
  %s8 = sld [smem:[#allocation0]]
  $region50: #{dueling_dqn_forward.1} parent=0
    _
  %s10 = ssub.s32 1, %s8
  %s11 = scalar_select 0, %s10, %s8
  $region1: #{dueling_dqn_forward.1} parent=0
    #allocation2 [shape = 'u8[131072]{0}', space=vmem, size = 0x20000, scoped, tag = 'input window, operand 1, single buffered']
    #allocation3 [shape = 's32[1]{0}', space=sflag, size = 0x4, scoped, tag = 'scoped memory for dueling_dqn_forward.1']
    #allocation4 [shape = 's32[1]{0}', space=sflag, size = 0x4, scoped, tag = 'scoped memory for dueling_dqn_forward.1']
    #allocation5 [shape = 'u8[262144]{0}', space=vmem, size = 0x40000, scoped, tag = 'input window, operand 3, single buffered']
    #allocation6 [shape = 's32[1]{0}', space=sflag, size = 0x4, scoped, tag = 'scoped memory for dueling_dqn_forward.1']
    #allocation7 [shape = 'u8[131072]{0}', space=vmem, size = 0x20000, scoped, tag = 'input window, operand 5, single buffered']
    #allocation8 [shape = 'u8[4096]{0}', space=vmem, size = 0x1000, scoped, tag = 'output window, operand 0, single buffered']
    %12 = vsyncpa [#allocation3], 0
    %13 = vsyncpa [#allocation6], 0
    %14 = vsyncpa [#allocation4], 0
    // Predicated region
    $region2: #{dueling_dqn_forward.1} parent=1 // pred_check
      _
    $region3: #{dueling_dqn_forward.1} parent=1 // pred_check_branch
      %16 = sbr.rel (0) target = $region5
    $region4: #{dueling_dqn_forward.1} parent=1 // pred_region
      _
    $region5: #{dueling_dqn_forward.1} parent=1 // pred_fallthru
      _
    // Predicated region
    $region6: #{dueling_dqn_forward.1} parent=1 // pred_check
      _
    $region7: #{dueling_dqn_forward.1} parent=1 // pred_check_branch
      %18 = sbr.rel (0) target = $region9
    $region8: #{dueling_dqn_forward.1} parent=1 // pred_region
      %s20 = ssub.s32 4096, 4096
      %21 = vsyncadd [#allocation3], %s20
      %s22 = sshll.u32 [#allocation2], 4
      %s23 = int_to_ptr.vmem [resolvable:$true] %s22
      %28 = dma.hbm_to_vmem [thread:$0]  %s1, 4096, %s23, [#allocation3], 256, 256, 16
    $region9: #{dueling_dqn_forward.1} parent=1 // pred_fallthru
      _
    // Predicated region
    $region10: #{dueling_dqn_forward.1} parent=1 // pred_check
      _
    $region11: #{dueling_dqn_forward.1} parent=1 // pred_check_branch
      %30 = sbr.rel (0) target = $region13
    $region12: #{dueling_dqn_forward.1} parent=1 // pred_region
      _
    $region13: #{dueling_dqn_forward.1} parent=1 // pred_fallthru
      _
    // Predicated region
    $region14: #{dueling_dqn_forward.1} parent=1 // pred_check
      _
    $region15: #{dueling_dqn_forward.1} parent=1 // pred_check_branch
      %32 = sbr.rel (0) target = $region17
    $region16: #{dueling_dqn_forward.1} parent=1 // pred_region
      %s34 = ssub.s32 8192, 8192
      %35 = vsyncadd [#allocation6], %s34
      %s36 = sshll.u32 [#allocation5], 4
      %s37 = int_to_ptr.vmem [resolvable:$true] %s36
      %42 = dma.hbm_to_vmem [thread:$0]  %s3, 8192, %s37, [#allocation6], 256, 256, 16
    $region17: #{dueling_dqn_forward.1} parent=1 // pred_fallthru
      _
    // Predicated region
    $region18: #{dueling_dqn_forward.1} parent=1 // pred_check
      _
    $region19: #{dueling_dqn_forward.1} parent=1 // pred_check_branch
      %44 = sbr.rel (0) target = $region21
    $region20: #{dueling_dqn_forward.1} parent=1 // pred_region
      _
    $region21: #{dueling_dqn_forward.1} parent=1 // pred_fallthru
      _
    // Predicated region
    $region22: #{dueling_dqn_forward.1} parent=1 // pred_check
      _
    $region23: #{dueling_dqn_forward.1} parent=1 // pred_check_branch
      %46 = sbr.rel (0) target = $region25
    $region24: #{dueling_dqn_forward.1} parent=1 // pred_region
      %s48 = ssub.s32 4096, 4096
      %49 = vsyncadd [#allocation6], %s48
      %s50 = sshll.u32 [#allocation7], 4
      %s51 = int_to_ptr.vmem [resolvable:$true] %s50
      %56 = dma.hbm_to_vmem [thread:$0]  %s5, 4096, %s51, [#allocation6], 128, 128, 8
    $region25: #{dueling_dqn_forward.1} parent=1 // pred_fallthru
      _
    // Predicated region
    $region26: #{dueling_dqn_forward.1} parent=1 // pred_check
      _
    $region27: #{dueling_dqn_forward.1} parent=1 // pred_check_branch
      %58 = sbr.rel (0) target = $region29
    $region28: #{dueling_dqn_forward.1} parent=1 // pred_region
      _
    $region29: #{dueling_dqn_forward.1} parent=1 // pred_fallthru
      _
    // Predicated region
    $region30: #{dueling_dqn_forward.1} parent=1 // pred_check
      _
    $region31: #{dueling_dqn_forward.1} parent=1 // pred_check_branch
      %60 = sbr.rel (0) target = $region33
    $region32: #{dueling_dqn_forward.1} parent=1 // pred_region
      %61 = dma.done [#allocation3], 4096
    $region33: #{dueling_dqn_forward.1} parent=1 // pred_fallthru
      _
    // Predicated region
    $region34: #{dueling_dqn_forward.1} parent=1 // pred_check
      _
    $region35: #{dueling_dqn_forward.1} parent=1 // pred_check_branch
      %63 = sbr.rel (0) target = $region37
    $region36: #{dueling_dqn_forward.1} parent=1 // pred_region
      %64 = dma.done [#allocation6], 8192
    $region37: #{dueling_dqn_forward.1} parent=1 // pred_fallthru
      _
    // Predicated region
    $region38: #{dueling_dqn_forward.1} parent=1 // pred_check
      _
    $region39: #{dueling_dqn_forward.1} parent=1 // pred_check_branch
      %66 = sbr.rel (0) target = $region41
    $region40: #{dueling_dqn_forward.1} parent=1 // pred_region
      %67 = dma.done [#allocation6], 4096
    $region41: #{dueling_dqn_forward.1} parent=1 // pred_fallthru
      _
    %v68 = vld [vmem:[%s0] sm:$0xff]
    %v69 = vld [vmem:[#allocation2] sm:$0xff]
    %v70 = vld [vmem:[#allocation2 + $0x8] sm:$0xff]
    %v71 = vld [vmem:[#allocation2 + $0x10] sm:$0xff]
    %v72 = vld [vmem:[#allocation2 + $0x18] sm:$0xff]
    %v73 = vld [vmem:[#allocation2 + $0x20] sm:$0xff]
    %v74 = vld [vmem:[#allocation2 + $0x28] sm:$0xff]
    %v75 = vld [vmem:[#allocation2 + $0x30] sm:$0xff]
    %v76 = vld [vmem:[#allocation2 + $0x38] sm:$0xff]
    %v77 = vld [vmem:[#allocation2 + $0x40] sm:$0xff]
    %v78 = vld [vmem:[#allocation2 + $0x48] sm:$0xff]
    %v79 = vld [vmem:[#allocation2 + $0x50] sm:$0xff]
    %v80 = vld [vmem:[#allocation2 + $0x58] sm:$0xff]
    %v81 = vld [vmem:[#allocation2 + $0x60] sm:$0xff]
    %v82 = vld [vmem:[#allocation2 + $0x68] sm:$0xff]
    %v83 = vld [vmem:[#allocation2 + $0x70] sm:$0xff]
    %v84 = vld [vmem:[#allocation2 + $0x78] sm:$0xff]
    %v85 = vld [vmem:[#allocation2 + $0x80] sm:$0xff]
    %v86 = vld [vmem:[#allocation2 + $0x88] sm:$0xff]
    %v87 = vld [vmem:[#allocation2 + $0x90] sm:$0xff]
    %v88 = vld [vmem:[#allocation2 + $0x98] sm:$0xff]
    %v89 = vld [vmem:[#allocation2 + $0xa0] sm:$0xff]
    %v90 = vld [vmem:[#allocation2 + $0xa8] sm:$0xff]
    %v91 = vld [vmem:[#allocation2 + $0xb0] sm:$0xff]
    %v92 = vld [vmem:[#allocation2 + $0xb8] sm:$0xff]
    %v93 = vld [vmem:[#allocation2 + $0xc0] sm:$0xff]
    %v94 = vld [vmem:[#allocation2 + $0xc8] sm:$0xff]
    %v95 = vld [vmem:[#allocation2 + $0xd0] sm:$0xff]
    %v96 = vld [vmem:[#allocation2 + $0xd8] sm:$0xff]
    %v97 = vld [vmem:[#allocation2 + $0xe0] sm:$0xff]
    %v98 = vld [vmem:[#allocation2 + $0xe8] sm:$0xff]
    %v99 = vld [vmem:[#allocation2 + $0xf0] sm:$0xff]
    %v100 = vld [vmem:[#allocation2 + $0xf8] sm:$0xff]
    %v101 = vld [vmem:[%s2] sm:$0x3]
    %v103 = vlaneseq
    %v104 = vshrl.u32 %v103, 7
    %v105 = vsub.s32 0, %v104
    %v106 = vrot.slane %v101, %v105
    %v107 = vlaneseq
    %v108 = vshrl.u32 %v107, 7
    %v109 = vsub.s32 1, %v108
    %v110 = vrot.slane %v101, %v109
    %113 = vmatprep.subr.mxu0 %v70
    %114 = vmatpush1.msra.mxu0 %v69
    %115 = vmatprep.subr.mxu0 %v72
    %116 = vmatpush1.msra.mxu0 %v71
    %117 = vmatprep.subr.mxu0 %v74
    %118 = vmatpush1.msra.mxu0 %v73
    %119 = vmatprep.subr.mxu0 %v76
    %120 = vmatpush1.msra.mxu0 %v75
    %121 = vmatprep.subr.mxu0 %v78
    %122 = vmatpush1.msra.mxu0 %v77
    %123 = vmatprep.subr.mxu0 %v80
    %124 = vmatpush1.msra.mxu0 %v79
    %125 = vmatprep.subr.mxu0 %v82
    %126 = vmatpush1.msra.mxu0 %v81
    %127 = vmatprep.subr.mxu0 %v84
    %128 = vmatpush1.msra.mxu0 %v83
    %129 = vmatprep.subr.mxu0 %v86
    %130 = vmatpush1.msra.mxu0 %v85
    %131 = vmatprep.subr.mxu0 %v88
    %132 = vmatpush1.msra.mxu0 %v87
    %133 = vmatprep.subr.mxu0 %v90
    %134 = vmatpush1.msra.mxu0 %v89
    %135 = vmatprep.subr.mxu0 %v92
    %136 = vmatpush1.msra.mxu0 %v91
    %137 = vmatprep.subr.mxu0 %v94
    %138 = vmatpush1.msra.mxu0 %v93
    %139 = vmatprep.subr.mxu0 %v96
    %140 = vmatpush1.msra.mxu0 %v95
    %141 = vmatprep.subr.mxu0 %v98
    %142 = vmatpush1.msra.mxu0 %v97
    %143 = vmatprep.subr.mxu0 %v100
    %144 = vmatpush1.msra.mxu0 %v99
    %145 = vmatprep.subr.mxu0 0.0
    %146 = vmatpush1.msra.mxu0 0.0
    %147 = vmatprep.subr.mxu0 0.0
    %148 = vmatpush1.msra.mxu0 0.0
    %149 = vmatprep.subr.mxu0 0.0
    %150 = vmatpush1.msra.mxu0 0.0
    %151 = vmatprep.subr.mxu0 0.0
    %152 = vmatpush1.msra.mxu0 0.0
    %153 = vmatprep.subr.mxu0 0.0
    %154 = vmatpush1.msra.mxu0 0.0
    %155 = vmatprep.subr.mxu0 0.0
    %156 = vmatpush1.msra.mxu0 0.0
    %157 = vmatprep.subr.mxu0 0.0
    %158 = vmatpush1.msra.mxu0 0.0
    %159 = vmatprep.subr.mxu0 0.0
    %160 = vmatpush1.msra.mxu0 0.0
    %161 = vmatprep.subr.mxu0 0.0
    %162 = vmatpush1.msra.mxu0 0.0
    %163 = vmatprep.subr.mxu0 0.0
    %164 = vmatpush1.msra.mxu0 0.0
    %165 = vmatprep.subr.mxu0 0.0
    %166 = vmatpush1.msra.mxu0 0.0
    %167 = vmatprep.subr.mxu0 0.0
    %168 = vmatpush1.msra.mxu0 0.0
    %169 = vmatprep.subr.mxu0 0.0
    %170 = vmatpush1.msra.mxu0 0.0
    %171 = vmatprep.subr.mxu0 0.0
    %172 = vmatpush1.msra.mxu0 0.0
    %173 = vmatprep.subr.mxu0 0.0
    %174 = vmatpush1.msra.mxu0 0.0
    %175 = vmatprep.subr.mxu0 0.0
    %176 = vmatpush1.msra.mxu0 0.0
    %177 = vmatprep.mubr.f32.mxu0 0.0
    %178 = vmatmul.mubr.f32.gmra.mrb[0].mxu0 %v68
    %v179 = vpop.f32.mrb[0].mxu0
    %v180 = vadd.f32 %v106, %v179
    %v181 = vpop.f32.mrb[0].mxu0
    %v182 = vadd.f32 %v110, %v181
    %183 = vdwg.mxu0
    %v184 = vmax.f32 %v180, 0.0
    %v185 = vmax.f32 %v182, 0.0
    %v186 = vld [vmem:[#allocation5] sm:$0xff]
    %v187 = vld [vmem:[#allocation5 + $0x8] sm:$0xff]
    %v188 = vld [vmem:[#allocation5 + $0x10] sm:$0xff]
    %v189 = vld [vmem:[#allocation5 + $0x18] sm:$0xff]
    %v190 = vld [vmem:[#allocation5 + $0x20] sm:$0xff]
    %v191 = vld [vmem:[#allocation5 + $0x28] sm:$0xff]
    %v192 = vld [vmem:[#allocation5 + $0x30] sm:$0xff]
    %v193 = vld [vmem:[#allocation5 + $0x38] sm:$0xff]
    %v194 = vld [vmem:[#allocation5 + $0x40] sm:$0xff]
    %v195 = vld [vmem:[#allocation5 + $0x48] sm:$0xff]
    %v196 = vld [vmem:[#allocation5 + $0x50] sm:$0xff]
    %v197 = vld [vmem:[#allocation5 + $0x58] sm:$0xff]
    %v198 = vld [vmem:[#allocation5 + $0x60] sm:$0xff]
    %v199 = vld [vmem:[#allocation5 + $0x68] sm:$0xff]
    %v200 = vld [vmem:[#allocation5 + $0x70] sm:$0xff]
    %v201 = vld [vmem:[#allocation5 + $0x78] sm:$0xff]
    %v202 = vld [vmem:[#allocation5 + $0x80] sm:$0xff]
    %v203 = vld [vmem:[#allocation5 + $0x88] sm:$0xff]
    %v204 = vld [vmem:[#allocation5 + $0x90] sm:$0xff]
    %v205 = vld [vmem:[#allocation5 + $0x98] sm:$0xff]
    %v206 = vld [vmem:[#allocation5 + $0xa0] sm:$0xff]
    %v207 = vld [vmem:[#allocation5 + $0xa8] sm:$0xff]
    %v208 = vld [vmem:[#allocation5 + $0xb0] sm:$0xff]
    %v209 = vld [vmem:[#allocation5 + $0xb8] sm:$0xff]
    %v210 = vld [vmem:[#allocation5 + $0xc0] sm:$0xff]
    %v211 = vld [vmem:[#allocation5 + $0xc8] sm:$0xff]
    %v212 = vld [vmem:[#allocation5 + $0xd0] sm:$0xff]
    %v213 = vld [vmem:[#allocation5 + $0xd8] sm:$0xff]
    %v214 = vld [vmem:[#allocation5 + $0xe0] sm:$0xff]
    %v215 = vld [vmem:[#allocation5 + $0xe8] sm:$0xff]
    %v216 = vld [vmem:[#allocation5 + $0xf0] sm:$0xff]
    %v217 = vld [vmem:[#allocation5 + $0xf8] sm:$0xff]
    %v218 = vld [vmem:[#allocation5 + $0x100] sm:$0xff]
    %v219 = vld [vmem:[#allocation5 + $0x108] sm:$0xff]
    %v220 = vld [vmem:[#allocation5 + $0x110] sm:$0xff]
    %v221 = vld [vmem:[#allocation5 + $0x118] sm:$0xff]
    %v222 = vld [vmem:[#allocation5 + $0x120] sm:$0xff]
    %v223 = vld [vmem:[#allocation5 + $0x128] sm:$0xff]
    %v224 = vld [vmem:[#allocation5 + $0x130] sm:$0xff]
    %v225 = vld [vmem:[#allocation5 + $0x138] sm:$0xff]
    %v226 = vld [vmem:[#allocation5 + $0x140] sm:$0xff]
    %v227 = vld [vmem:[#allocation5 + $0x148] sm:$0xff]
    %v228 = vld [vmem:[#allocation5 + $0x150] sm:$0xff]
    %v229 = vld [vmem:[#allocation5 + $0x158] sm:$0xff]
    %v230 = vld [vmem:[#allocation5 + $0x160] sm:$0xff]
    %v231 = vld [vmem:[#allocation5 + $0x168] sm:$0xff]
    %v232 = vld [vmem:[#allocation5 + $0x170] sm:$0xff]
    %v233 = vld [vmem:[#allocation5 + $0x178] sm:$0xff]
    %v234 = vld [vmem:[#allocation5 + $0x180] sm:$0xff]
    %v235 = vld [vmem:[#allocation5 + $0x188] sm:$0xff]
    %v236 = vld [vmem:[#allocation5 + $0x190] sm:$0xff]
    %v237 = vld [vmem:[#allocation5 + $0x198] sm:$0xff]
    %v238 = vld [vmem:[#allocation5 + $0x1a0] sm:$0xff]
    %v239 = vld [vmem:[#allocation5 + $0x1a8] sm:$0xff]
    %v240 = vld [vmem:[#allocation5 + $0x1b0] sm:$0xff]
    %v241 = vld [vmem:[#allocation5 + $0x1b8] sm:$0xff]
    %v242 = vld [vmem:[#allocation5 + $0x1c0] sm:$0xff]
    %v243 = vld [vmem:[#allocation5 + $0x1c8] sm:$0xff]
    %v244 = vld [vmem:[#allocation5 + $0x1d0] sm:$0xff]
    %v245 = vld [vmem:[#allocation5 + $0x1d8] sm:$0xff]
    %v246 = vld [vmem:[#allocation5 + $0x1e0] sm:$0xff]
    %v247 = vld [vmem:[#allocation5 + $0x1e8] sm:$0xff]
    %v248 = vld [vmem:[#allocation5 + $0x1f0] sm:$0xff]
    %v249 = vld [vmem:[#allocation5 + $0x1f8] sm:$0xff]
    %v250 = vld [vmem:[%s4] sm:$0x3]
    %v252 = vlaneseq
    %v253 = vshrl.u32 %v252, 7
    %v254 = vsub.s32 0, %v253
    %v255 = vrot.slane %v250, %v254
    %v256 = vlaneseq
    %v257 = vshrl.u32 %v256, 7
    %v258 = vsub.s32 1, %v257
    %v259 = vrot.slane %v250, %v258
    %262 = vmatprep.subr.mxu0 %v187
    %263 = vmatpush1.msra.mxu0 %v186
    %264 = vmatprep.subr.mxu0 %v189
    %265 = vmatpush1.msra.mxu0 %v188
    %266 = vmatprep.subr.mxu0 %v191
    %267 = vmatpush1.msra.mxu0 %v190
    %268 = vmatprep.subr.mxu0 %v193
    %269 = vmatpush1.msra.mxu0 %v192
    %270 = vmatprep.subr.mxu0 %v195
    %271 = vmatpush1.msra.mxu0 %v194
    %272 = vmatprep.subr.mxu0 %v197
    %273 = vmatpush1.msra.mxu0 %v196
    %274 = vmatprep.subr.mxu0 %v199
    %275 = vmatpush1.msra.mxu0 %v198
    %276 = vmatprep.subr.mxu0 %v201
    %277 = vmatpush1.msra.mxu0 %v200
    %278 = vmatprep.subr.mxu0 %v203
    %279 = vmatpush1.msra.mxu0 %v202
    %280 = vmatprep.subr.mxu0 %v205
    %281 = vmatpush1.msra.mxu0 %v204
    %282 = vmatprep.subr.mxu0 %v207
    %283 = vmatpush1.msra.mxu0 %v206
    %284 = vmatprep.subr.mxu0 %v209
    %285 = vmatpush1.msra.mxu0 %v208
    %286 = vmatprep.subr.mxu0 %v211
    %287 = vmatpush1.msra.mxu0 %v210
    %288 = vmatprep.subr.mxu0 %v213
    %289 = vmatpush1.msra.mxu0 %v212
    %290 = vmatprep.subr.mxu0 %v215
    %291 = vmatpush1.msra.mxu0 %v214
    %292 = vmatprep.subr.mxu0 %v217
    %293 = vmatpush1.msra.mxu0 %v216
    %294 = vmatprep.subr.mxu0 %v219
    %295 = vmatpush1.msra.mxu0 %v218
    %296 = vmatprep.subr.mxu0 %v221
    %297 = vmatpush1.msra.mxu0 %v220
    %298 = vmatprep.subr.mxu0 %v223
    %299 = vmatpush1.msra.mxu0 %v222
    %300 = vmatprep.subr.mxu0 %v225
    %301 = vmatpush1.msra.mxu0 %v224
    %302 = vmatprep.subr.mxu0 %v227
    %303 = vmatpush1.msra.mxu0 %v226
    %304 = vmatprep.subr.mxu0 %v229
    %305 = vmatpush1.msra.mxu0 %v228
    %306 = vmatprep.subr.mxu0 %v231
    %307 = vmatpush1.msra.mxu0 %v230
    %308 = vmatprep.subr.mxu0 %v233
    %309 = vmatpush1.msra.mxu0 %v232
    %310 = vmatprep.subr.mxu0 %v235
    %311 = vmatpush1.msra.mxu0 %v234
    %312 = vmatprep.subr.mxu0 %v237
    %313 = vmatpush1.msra.mxu0 %v236
    %314 = vmatprep.subr.mxu0 %v239
    %315 = vmatpush1.msra.mxu0 %v238
    %316 = vmatprep.subr.mxu0 %v241
    %317 = vmatpush1.msra.mxu0 %v240
    %318 = vmatprep.subr.mxu0 %v243
    %319 = vmatpush1.msra.mxu0 %v242
    %320 = vmatprep.subr.mxu0 %v245
    %321 = vmatpush1.msra.mxu0 %v244
    %322 = vmatprep.subr.mxu0 %v247
    %323 = vmatpush1.msra.mxu0 %v246
    %324 = vmatprep.subr.mxu0 %v249
    %325 = vmatpush1.msra.mxu0 %v248
    %326 = vmatprep.mubr.f32.mxu0 %v185
    %327 = vmatmul.mubr.f32.gmra.mrb[0].mxu0 %v184
    %v328 = vpop.f32.mrb[0].mxu0
    %v329 = vadd.f32 %v255, %v328
    %v330 = vpop.f32.mrb[0].mxu0
    %v331 = vadd.f32 %v259, %v330
    %332 = vdwg.mxu0
    %v333 = vmax.f32 %v329, 0.0
    %v334 = vmax.f32 %v331, 0.0
    %v335 = vld [vmem:[#allocation7] sm:$0xff]
    %v336 = vld [vmem:[#allocation7 + $0x8] sm:$0xff]
    %v337 = vld [vmem:[#allocation7 + $0x10] sm:$0xff]
    %v338 = vld [vmem:[#allocation7 + $0x18] sm:$0xff]
    %v339 = vld [vmem:[#allocation7 + $0x20] sm:$0xff]
    %v340 = vld [vmem:[#allocation7 + $0x28] sm:$0xff]
    %v341 = vld [vmem:[#allocation7 + $0x30] sm:$0xff]
    %v342 = vld [vmem:[#allocation7 + $0x38] sm:$0xff]
    %v343 = vld [vmem:[#allocation7 + $0x40] sm:$0xff]
    %v344 = vld [vmem:[#allocation7 + $0x48] sm:$0xff]
    %v345 = vld [vmem:[#allocation7 + $0x50] sm:$0xff]
    %v346 = vld [vmem:[#allocation7 + $0x58] sm:$0xff]
    %v347 = vld [vmem:[#allocation7 + $0x60] sm:$0xff]
    %v348 = vld [vmem:[#allocation7 + $0x68] sm:$0xff]
    %v349 = vld [vmem:[#allocation7 + $0x70] sm:$0xff]
    %v350 = vld [vmem:[#allocation7 + $0x78] sm:$0xff]
    %v351 = vld [vmem:[#allocation7 + $0x80] sm:$0xff]
    %v352 = vld [vmem:[#allocation7 + $0x88] sm:$0xff]
    %v353 = vld [vmem:[#allocation7 + $0x90] sm:$0xff]
    %v354 = vld [vmem:[#allocation7 + $0x98] sm:$0xff]
    %v355 = vld [vmem:[#allocation7 + $0xa0] sm:$0xff]
    %v356 = vld [vmem:[#allocation7 + $0xa8] sm:$0xff]
    %v357 = vld [vmem:[#allocation7 + $0xb0] sm:$0xff]
    %v358 = vld [vmem:[#allocation7 + $0xb8] sm:$0xff]
    %v359 = vld [vmem:[#allocation7 + $0xc0] sm:$0xff]
    %v360 = vld [vmem:[#allocation7 + $0xc8] sm:$0xff]
    %v361 = vld [vmem:[#allocation7 + $0xd0] sm:$0xff]
    %v362 = vld [vmem:[#allocation7 + $0xd8] sm:$0xff]
    %v363 = vld [vmem:[#allocation7 + $0xe0] sm:$0xff]
    %v364 = vld [vmem:[#allocation7 + $0xe8] sm:$0xff]
    %v365 = vld [vmem:[#allocation7 + $0xf0] sm:$0xff]
    %v366 = vld [vmem:[#allocation7 + $0xf8] sm:$0xff]
    %v367 = vld [vmem:[%s6] sm:$0x1]
    %v369 = vlaneseq
    %v370 = vshrl.u32 %v369, 7
    %v371 = vsub.s32 0, %v370
    %v372 = vrot.slane %v367, %v371
    %374 = vmatprep.subr.mxu0 0.0
    %375 = vmatpush1.msra.mxu0 %v335
    %376 = vmatprep.subr.mxu0 0.0
    %377 = vmatpush1.msra.mxu0 %v336
    %378 = vmatprep.subr.mxu0 0.0
    %379 = vmatpush1.msra.mxu0 %v337
    %380 = vmatprep.subr.mxu0 0.0
    %381 = vmatpush1.msra.mxu0 %v338
    %382 = vmatprep.subr.mxu0 0.0
    %383 = vmatpush1.msra.mxu0 %v339
    %384 = vmatprep.subr.mxu0 0.0
    %385 = vmatpush1.msra.mxu0 %v340
    %386 = vmatprep.subr.mxu0 0.0
    %387 = vmatpush1.msra.mxu0 %v341
    %388 = vmatprep.subr.mxu0 0.0
    %389 = vmatpush1.msra.mxu0 %v342
    %390 = vmatprep.subr.mxu0 0.0
    %391 = vmatpush1.msra.mxu0 %v343
    %392 = vmatprep.subr.mxu0 0.0
    %393 = vmatpush1.msra.mxu0 %v344
    %394 = vmatprep.subr.mxu0 0.0
    %395 = vmatpush1.msra.mxu0 %v345
    %396 = vmatprep.subr.mxu0 0.0
    %397 = vmatpush1.msra.mxu0 %v346
    %398 = vmatprep.subr.mxu0 0.0
    %399 = vmatpush1.msra.mxu0 %v347
    %400 = vmatprep.subr.mxu0 0.0
    %401 = vmatpush1.msra.mxu0 %v348
    %402 = vmatprep.subr.mxu0 0.0
    %403 = vmatpush1.msra.mxu0 %v349
    %404 = vmatprep.subr.mxu0 0.0
    %405 = vmatpush1.msra.mxu0 %v350
    %406 = vmatprep.subr.mxu0 0.0
    %407 = vmatpush1.msra.mxu0 %v351
    %408 = vmatprep.subr.mxu0 0.0
    %409 = vmatpush1.msra.mxu0 %v352
    %410 = vmatprep.subr.mxu0 0.0
    %411 = vmatpush1.msra.mxu0 %v353
    %412 = vmatprep.subr.mxu0 0.0
    %413 = vmatpush1.msra.mxu0 %v354
    %414 = vmatprep.subr.mxu0 0.0
    %415 = vmatpush1.msra.mxu0 %v355
    %416 = vmatprep.subr.mxu0 0.0
    %417 = vmatpush1.msra.mxu0 %v356
    %418 = vmatprep.subr.mxu0 0.0
    %419 = vmatpush1.msra.mxu0 %v357
    %420 = vmatprep.subr.mxu0 0.0
    %421 = vmatpush1.msra.mxu0 %v358
    %422 = vmatprep.subr.mxu0 0.0
    %423 = vmatpush1.msra.mxu0 %v359
    %424 = vmatprep.subr.mxu0 0.0
    %425 = vmatpush1.msra.mxu0 %v360
    %426 = vmatprep.subr.mxu0 0.0
    %427 = vmatpush1.msra.mxu0 %v361
    %428 = vmatprep.subr.mxu0 0.0
    %429 = vmatpush1.msra.mxu0 %v362
    %430 = vmatprep.subr.mxu0 0.0
    %431 = vmatpush1.msra.mxu0 %v363
    %432 = vmatprep.subr.mxu0 0.0
    %433 = vmatpush1.msra.mxu0 %v364
    %434 = vmatprep.subr.mxu0 0.0
    %435 = vmatpush1.msra.mxu0 %v365
    %436 = vmatprep.subr.mxu0 0.0
    %437 = vmatpush1.msra.mxu0 %v366
    %438 = vmatprep.mubr.f32.mxu0 %v334
    %439 = vmatmul.mubr.f32.gmra.mrb[0].mxu0 %v333
    %v440 = vpop.f32.mrb[0].mxu0
    %v441 = vadd.f32 %v372, %v440
    %v442 = vpop.f32.mrb[0].mxu0
    %443 = vdwg.mxu0
    %444 = vadd.xlane.f32.xlu0 %v441
    %v445 = vpop.xlane.xlu0 %444
    %v446 = vsub.f32 %v445, %v441
    %v447 = vmul.f32 %v446, 0.0625
    %449 = vset.pattern.permute.xlu0 16
    %450 = vperm.xlu0 %449, %v441
    %v451 = vpop.permute.xlu0 %450
    %v453 = vadd.f32 %v451, %v441
    %455 = vset.pattern.permute.xlu0 16
    %456 = vperm.xlu0 %455, %v447
    %v457 = vpop.permute.xlu0 %456
    %v459 = vsub.f32 %v453, %v457
    %v460 = vtanh.pop %v459
    %461 = vst [vmem:[#allocation8] sm:$0xff] %v460
    // Predicated region
    $region42: #{dueling_dqn_forward.1} parent=1 // pred_check
      _
    $region43: #{dueling_dqn_forward.1} parent=1 // pred_check_branch
      %463 = sbr.rel (0) target = $region45
    $region44: #{dueling_dqn_forward.1} parent=1 // pred_region
      %s465 = ssub.s32 128, 128
      %466 = vsyncadd [#allocation4], %s465
      %s468 = sshll.u32 [#allocation8], 4
      %s469 = int_to_ptr.vmem [resolvable:$true] %s468
      %471 = dma.vmem_to_hbm [thread:$0]  %s469, 128, %s7, [#allocation4]
    $region45: #{dueling_dqn_forward.1} parent=1 // pred_fallthru
      _
    // Predicated region
    $region46: #{dueling_dqn_forward.1} parent=1 // pred_check
      _
    $region47: #{dueling_dqn_forward.1} parent=1 // pred_check_branch
      %473 = sbr.rel (0) target = $region49
    $region48: #{dueling_dqn_forward.1} parent=1 // pred_region
      %474 = dma.done [#allocation4], 128
    $region49: #{dueling_dqn_forward.1} parent=1 // pred_fallthru
      _
    %475 = vsyncpa [#allocation3], 1
    %476 = vsyncpa [#allocation6], 1
    %477 = vsyncpa [#allocation4], 1

</llo_original>
